<compile_context>
chip_gen: v5e
topology: v5e:2x2
jax: 0.10.0
libtpu: 0.0.40
codegen_flags: <defaults>
</compile_context>

<pallas_src>
import jax
import jax.numpy as jnp
from jax import lax
from jax.experimental import pallas as pl
from jax.experimental.pallas import tpu as pltpu

EPS = 1e-5  # torch.nn.LayerNorm default eps


def _layernorm(x, gamma):
    # LayerNorm(weight=True, bias=False): biased variance, like F.layer_norm.
    mu = jnp.mean(x, axis=-1, keepdims=True)
    xc = x - mu
    var = jnp.mean(xc * xc, axis=-1, keepdims=True)
    return xc * lax.rsqrt(var + EPS) * gamma


def _pick_chunk(seq_len):
    for c in (128, 64, 32, 16, 8):
        if seq_len % c == 0:
            return c
    return seq_len  # odd / tiny sequence: single chunk covering the whole sequence


def simple_recurrent_block_kernel(
    x_ref, g_pre_ref, w_fused_ref, wo_ref, g_post_ref,   # inputs
    out_ref,                                             # output
    state_scr,                                           # (D, D) f32, carried across chunks
):
    chunk_idx = pl.program_id(1)
    C, D = x_ref.shape[1], x_ref.shape[2]

    @pl.when(chunk_idx == 0)
    def _init_state():
        state_scr[...] = jnp.zeros_like(state_scr)

    x = x_ref[0]                          # (C, D) f32
    g_pre = g_pre_ref[...]                # (1, D)
    g_post = g_post_ref[...]              # (1, D)

    # ---- pre_norm ----
    xn = _layernorm(x, g_pre)

    # ---- fused q/k/v/beta projection: one wide bf16 MXU matmul, f32 accumulation ----
    proj = jnp.dot(xn.astype(jnp.bfloat16), w_fused_ref[...],
                   preferred_element_type=jnp.float32)          # (C, 3D+1)
    q = proj[:, 0:D]
    k = proj[:, D:2 * D]
    v = proj[:, 2 * D:3 * D]
    beta = jax.nn.sigmoid(proj[:, 3 * D:3 * D + 1])             # (C, 1)

    # L2-normalize keys (standard delta-rule stabilization).
    # TODO(synk): exact DeltaRule internals (activations / normalizations) are
    # reconstructed; the dependent class source was not provided.
    k = k * lax.rsqrt(jnp.sum(k * k, axis=-1, keepdims=True) + 1e-6)

    # ---- chunked delta rule (UT transform) ----
    row = lax.broadcasted_iota(jnp.int32, (C, C), 0)
    col = lax.broadcasted_iota(jnp.int32, (C, C), 1)
    strict_lower = col < row
    incl_lower = col <= row
    eye = (row == col).astype(jnp.float32)

    s0 = state_scr[...]                                           # (D, D) chunk-initial state
    kT = k.T                                                      # (D, C), once per chunk

    a_kk = jnp.dot(k, kT, preferred_element_type=jnp.float32)     # (C, C)
    # M = I + strict_tril(beta * K K^T) is unit lower triangular; N = -(strict part).
    n_mat = jnp.where(strict_lower, -(beta * a_kk), 0.0)
    # M^{-1} = sum_i N^i (N nilpotent); doubling: R_k = sum_{i<2^k} N^i, need 2^k >= C.
    r_inv = eye + n_mat
    n_steps = max(0, (C - 1).bit_length() - 1)
    if n_steps > 0:
        p = jnp.dot(n_mat, n_mat, preferred_element_type=jnp.float32)
        for step in range(n_steps):
            r_inv = r_inv + jnp.dot(r_inv, p, preferred_element_type=jnp.float32)
            if step + 1 < n_steps:
                p = jnp.dot(p, p, preferred_element_type=jnp.float32)

    # Pseudo-values U: u_t = beta_t (v_t - k_t S_{t-1}) solved for the whole chunk.
    rhs = beta * (v - jnp.dot(k, s0, preferred_element_type=jnp.float32))    # (C, D)
    u = jnp.dot(r_inv, rhs, preferred_element_type=jnp.float32)              # (C, D)

    # Outputs: o_t = q_t S_t = q_t S_0 + sum_{j<=t} (q_t . k_j) u_j
    a_qk = jnp.dot(q, kT, preferred_element_type=jnp.float32)                # (C, C)
    o = (jnp.dot(q, s0, preferred_element_type=jnp.float32)
         + jnp.dot(jnp.where(incl_lower, a_qk, 0.0), u,
                   preferred_element_type=jnp.float32))                      # (C, D)

    # Carry state to the next chunk: S <- S_0 + K^T U.
    state_scr[...] = s0 + jnp.dot(kT, u, preferred_element_type=jnp.float32)

    # ---- output projection (bf16 MXU) + post_norm, written per chunk ----
    y = jnp.dot(o.astype(jnp.bfloat16), wo_ref[...],
                preferred_element_type=jnp.float32)                          # (C, D)
    out_ref[0] = _layernorm(y, g_post).astype(out_ref.dtype)


def simple_recurrent_block(x, params):
    B, S, D = x.shape
    g_pre, wq, wk, wv, wb, wo, g_post = params

    C = _pick_chunk(S)
    n_chunks = S // C

    # Fuse the four projection weights into one (D, 3D+1) matrix; bf16 MXU operands.
    w_fused = jnp.concatenate([wq, wk, wv, wb], axis=1).astype(jnp.bfloat16)
    wo_b = wo.astype(jnp.bfloat16)

    def rep(shape):
        return pl.BlockSpec(shape, lambda b, c: (0,) * len(shape))

    return pl.pallas_call(
        simple_recurrent_block_kernel,
        out_shape=jax.ShapeDtypeStruct((B, S, D), x.dtype),
        grid_spec=pltpu.PrefetchScalarGridSpec(
            num_scalar_prefetch=0,
            grid=(B, n_chunks),
            in_specs=[
                pl.BlockSpec((1, C, D), lambda b, c: (b, c, 0)),  # x sequence chunk
                rep((1, D)),             # pre_norm weight
                rep((D, 3 * D + 1)),     # fused [W_q | W_k | W_v | w_beta]
                rep((D, D)),             # W_out
                rep((1, D)),             # post_norm weight
            ],
            out_specs=pl.BlockSpec((1, C, D), lambda b, c: (b, c, 0)),
            scratch_shapes=[
                pltpu.VMEM((D, D), jnp.float32),   # delta-rule state, carried over chunks
            ],
        ),
        compiler_params=pltpu.CompilerParams(
            dimension_semantics=("parallel", "arbitrary")),
    )(x, g_pre, w_fused, wo_b, g_post)


if __name__ == "__main__":
    B, S, D = 2, 8, 32   # batch=2, seq=8, embedding_dim=32
    key = jax.random.PRNGKey(0)
    kx, kq, kk, kv, kb, ko = jax.random.split(key, 6)

    x = jax.random.normal(kx, (B, S, D), jnp.float32)

    scale = 1.0 / jnp.sqrt(jnp.float32(D))
    g_pre = jnp.ones((1, D), jnp.float32)    # LayerNorm weight (bias=False)
    g_post = jnp.ones((1, D), jnp.float32)
    wq = jax.random.normal(kq, (D, D), jnp.float32) * scale
    wk = jax.random.normal(kk, (D, D), jnp.float32) * scale
    wv = jax.random.normal(kv, (D, D), jnp.float32) * scale
    wb = jax.random.normal(kb, (D, 1), jnp.float32) * scale
    wo = jax.random.normal(ko, (D, D), jnp.float32) * scale

    out = simple_recurrent_block(x, (g_pre, wq, wk, wv, wb, wo, g_post))
    jax.block_until_ready(out)
    assert out.shape == (B, S, D)
    print("KERNEL_OK")
</pallas_src>

<mosaic_0001>
module attributes {stable_mosaic.version = 11 : i64} {
  func.func @simple_recurrent_block_kernel(%arg0: i32, %arg1: i32, %arg2: memref<1x8x32xf32, #tpu.memory_space<vmem>>, %arg3: memref<1x32xf32, #tpu.memory_space<vmem>>, %arg4: memref<32x97xbf16, #tpu.memory_space<vmem>>, %arg5: memref<32x32xbf16, #tpu.memory_space<vmem>>, %arg6: memref<1x32xf32, #tpu.memory_space<vmem>>, %arg7: memref<1x8x32xf32, #tpu.memory_space<vmem>>, %arg8: memref<32x32xf32, #tpu.memory_space<vmem>>) attributes {dimension_semantics = [#tpu.dimension_semantics<parallel>, #tpu.dimension_semantics<arbitrary>], iteration_bounds = array<i64: 2, 1>, scalar_prefetch = 0 : i64, scratch_operands = 1 : i64, tpu.core_type = #tpu.core_type<tc>, window_params = [{transform_indices = @transform_0, window_bounds = array<i64: 1, 8, 32>}, {pipeline_mode = #tpu.pipeline_mode<synchronous>, transform_indices = @transform_1, window_bounds = array<i64: 1, 32>}, {pipeline_mode = #tpu.pipeline_mode<synchronous>, transform_indices = @transform_2, window_bounds = array<i64: 32, 97>}, {pipeline_mode = #tpu.pipeline_mode<synchronous>, transform_indices = @transform_3, window_bounds = array<i64: 32, 32>}, {pipeline_mode = #tpu.pipeline_mode<synchronous>, transform_indices = @transform_4, window_bounds = array<i64: 1, 32>}, {transform_indices = @transform_5, window_bounds = array<i64: 1, 8, 32>}]} {
    %c0_i32 = arith.constant 0 : i32
    %0 = arith.cmpi eq, %arg1, %c0_i32 : i32
    %1 = arith.extui %0 : i1 to i32
    %c0_i32_0 = arith.constant 0 : i32
    %2 = arith.cmpi ne, %1, %c0_i32_0 : i32
    scf.if %2 {
      %cst_46 = arith.constant 0.000000e+00 : f32
      %106 = vector.broadcast %cst_46 : f32 to vector<32x32xf32>
      %c0_47 = arith.constant 0 : index
      %c0_48 = arith.constant 0 : index
      %107 = vector.load %arg8[%c0_47, %c0_48] : memref<32x32xf32, #tpu.memory_space<vmem>>, vector<32x32xf32>
      tpu.vector_store %arg8[%c0_47, %c0_48], %106 {strides = array<i32>} : memref<32x32xf32, #tpu.memory_space<vmem>>, vector<32x32xf32>,
    } else {
    }
    %c0 = arith.constant 0 : index
    %c0_1 = arith.constant 0 : index
    %c0_2 = arith.constant 0 : index
    %3 = vector.load %arg2[%c0, %c0_1, %c0_2] : memref<1x8x32xf32, #tpu.memory_space<vmem>>, vector<1x8x32xf32>
    %4 = vector.shape_cast %3 : vector<1x8x32xf32> to vector<8x32xf32>
    %c0_3 = arith.constant 0 : index
    %c0_4 = arith.constant 0 : index
    %5 = vector.load %arg3[%c0_3, %c0_4] : memref<1x32xf32, #tpu.memory_space<vmem>>, vector<1x32xf32>
    %c0_5 = arith.constant 0 : index
    %c0_6 = arith.constant 0 : index
    %6 = vector.load %arg6[%c0_5, %c0_6] : memref<1x32xf32, #tpu.memory_space<vmem>>, vector<1x32xf32>
    %cst = arith.constant dense<0.000000e+00> : vector<8xf32>
    %7 = vector.multi_reduction <add>, %4, %cst [1] : vector<8x32xf32> to vector<8xf32>
    %8 = vector.shape_cast %7 : vector<8xf32> to vector<8x1xf32>
    %cst_7 = arith.constant 3.200000e+01 : f32
    %9 = vector.broadcast %cst_7 : f32 to vector<8x1xf32>
    %10 = arith.divf %8, %9 : vector<8x1xf32>
    %11 = vector.broadcast %10 : vector<8x1xf32> to vector<8x32xf32>
    %12 = arith.subf %4, %11 : vector<8x32xf32>
    %13 = arith.mulf %12, %12 : vector<8x32xf32>
    %cst_8 = arith.constant dense<0.000000e+00> : vector<8xf32>
    %14 = vector.multi_reduction <add>, %13, %cst_8 [1] : vector<8x32xf32> to vector<8xf32>
    %15 = vector.shape_cast %14 : vector<8xf32> to vector<8x1xf32>
    %cst_9 = arith.constant 3.200000e+01 : f32
    %16 = vector.broadcast %cst_9 : f32 to vector<8x1xf32>
    %17 = arith.divf %15, %16 : vector<8x1xf32>
    %cst_10 = arith.constant 9.99999974E-6 : f32
    %18 = vector.broadcast %cst_10 : f32 to vector<8x1xf32>
    %19 = arith.addf %17, %18 : vector<8x1xf32>
    %20 = math.rsqrt %19 : vector<8x1xf32>
    %21 = vector.broadcast %20 : vector<8x1xf32> to vector<8x32xf32>
    %22 = arith.mulf %12, %21 : vector<8x32xf32>
    %23 = vector.broadcast %5 : vector<1x32xf32> to vector<8x32xf32>
    %24 = arith.mulf %22, %23 : vector<8x32xf32>
    %25 = arith.truncf %24 : vector<8x32xf32> to vector<8x32xbf16>
    %c0_11 = arith.constant 0 : index
    %c0_12 = arith.constant 0 : index
    %26 = vector.load %arg4[%c0_11, %c0_12] : memref<32x97xbf16, #tpu.memory_space<vmem>>, vector<32x97xbf16>
    %cst_13 = arith.constant dense<0.000000e+00> : vector<8x97xf32>
    %27 = tpu.matmul %25, %26, %cst_13 {dimension_numbers = #tpu.dot_dimension_numbers<[1], [0], [0], [1], [0, 0, 1, 1], [], []>} : vector<8x32xbf16>, vector<32x97xbf16>, vector<8x97xf32> -> vector<8x97xf32>
    %28 = vector.extract_strided_slice %27 {offsets = [0, 0], sizes = [8, 32], strides = [1, 1]} : vector<8x97xf32> to vector<8x32xf32>
    %29 = vector.extract_strided_slice %27 {offsets = [0, 32], sizes = [8, 32], strides = [1, 1]} : vector<8x97xf32> to vector<8x32xf32>
    %30 = vector.extract_strided_slice %27 {offsets = [0, 64], sizes = [8, 32], strides = [1, 1]} : vector<8x97xf32> to vector<8x32xf32>
    %31 = vector.extract_strided_slice %27 {offsets = [0, 96], sizes = [8, 1], strides = [1, 1]} : vector<8x97xf32> to vector<8x1xf32>
    %32 = arith.negf %31 : vector<8x1xf32>
    %33 = math.exp %32 : vector<8x1xf32>
    %cst_14 = arith.constant 1.000000e+00 : f32
    %34 = vector.broadcast %cst_14 : f32 to vector<8x1xf32>
    %35 = arith.addf %34, %33 : vector<8x1xf32>
    %36 = arith.divf %34, %35 : vector<8x1xf32>
    %37 = arith.mulf %29, %29 : vector<8x32xf32>
    %cst_15 = arith.constant dense<0.000000e+00> : vector<8xf32>
    %38 = vector.multi_reduction <add>, %37, %cst_15 [1] : vector<8x32xf32> to vector<8xf32>
    %39 = vector.shape_cast %38 : vector<8xf32> to vector<8x1xf32>
    %cst_16 = arith.constant 9.99999997E-7 : f32
    %40 = vector.broadcast %cst_16 : f32 to vector<8x1xf32>
    %41 = arith.addf %39, %40 : vector<8x1xf32>
    %42 = math.rsqrt %41 : vector<8x1xf32>
    %43 = vector.broadcast %42 : vector<8x1xf32> to vector<8x32xf32>
    %44 = arith.mulf %29, %43 : vector<8x32xf32>
    %45 = tpu.iota {dimensions = array<i32: 0>} : vector<8x8xi32>
    %46 = tpu.iota {dimensions = array<i32: 1>} : vector<8x8xi32>
    %47 = arith.cmpi slt, %46, %45 : vector<8x8xi32>
    %48 = arith.cmpi sle, %46, %45 : vector<8x8xi32>
    %49 = arith.cmpi eq, %45, %46 : vector<8x8xi32>
    %50 = arith.extui %49 : vector<8x8xi1> to vector<8x8xi32>
    %51 = arith.sitofp %50 : vector<8x8xi32> to vector<8x8xf32>
    %c0_17 = arith.constant 0 : index
    %c0_18 = arith.constant 0 : index
    %52 = vector.load %arg8[%c0_17, %c0_18] : memref<32x32xf32, #tpu.memory_space<vmem>>, vector<32x32xf32>
    %53 = tpu.transpose %44, [1, 0] : vector<8x32xf32> -> vector<32x8xf32>
    %cst_19 = arith.constant dense<0.000000e+00> : vector<8x8xf32>
    %54 = tpu.matmul %44, %53, %cst_19 {dimension_numbers = #tpu.dot_dimension_numbers<[1], [0], [0], [1], [0, 0, 1, 1], [], []>} : vector<8x32xf32>, vector<32x8xf32>, vector<8x8xf32> -> vector<8x8xf32>
    %55 = vector.broadcast %36 : vector<8x1xf32> to vector<8x8xf32>
    %56 = arith.mulf %55, %54 : vector<8x8xf32>
    %cst_20 = arith.constant 0.000000e+00 : f32
    %57 = vector.broadcast %cst_20 : f32 to vector<8x8xf32>
    %58 = arith.subf %57, %56 : vector<8x8xf32>
    %cst_21 = arith.constant 0.000000e+00 : f32
    %59 = vector.broadcast %cst_21 : f32 to vector<8x8xf32>
    %60 = arith.select %47, %58, %59 : vector<8x8xi1>, vector<8x8xf32>
    %61 = arith.addf %51, %60 : vector<8x8xf32>
    %cst_22 = arith.constant dense<0.000000e+00> : vector<8x8xf32>
    %62 = tpu.matmul %60, %60, %cst_22 {dimension_numbers = #tpu.dot_dimension_numbers<[1], [0], [0], [1], [0, 0, 1, 1], [], []>} : vector<8x8xf32>, vector<8x8xf32>, vector<8x8xf32> -> vector<8x8xf32>
    %cst_23 = arith.constant dense<0.000000e+00> : vector<8x8xf32>
    %63 = tpu.matmul %61, %62, %cst_23 {dimension_numbers = #tpu.dot_dimension_numbers<[1], [0], [0], [1], [0, 0, 1, 1], [], []>} : vector<8x8xf32>, vector<8x8xf32>, vector<8x8xf32> -> vector<8x8xf32>
    %64 = arith.addf %61, %63 : vector<8x8xf32>
    %cst_24 = arith.constant dense<0.000000e+00> : vector<8x8xf32>
    %65 = tpu.matmul %62, %62, %cst_24 {dimension_numbers = #tpu.dot_dimension_numbers<[1], [0], [0], [1], [0, 0, 1, 1], [], []>} : vector<8x8xf32>, vector<8x8xf32>, vector<8x8xf32> -> vector<8x8xf32>
    %cst_25 = arith.constant dense<0.000000e+00> : vector<8x8xf32>
    %66 = tpu.matmul %64, %65, %cst_25 {dimension_numbers = #tpu.dot_dimension_numbers<[1], [0], [0], [1], [0, 0, 1, 1], [], []>} : vector<8x8xf32>, vector<8x8xf32>, vector<8x8xf32> -> vector<8x8xf32>
    %67 = arith.addf %64, %66 : vector<8x8xf32>
    %cst_26 = arith.constant dense<0.000000e+00> : vector<8x32xf32>
    %68 = tpu.matmul %44, %52, %cst_26 {dimension_numbers = #tpu.dot_dimension_numbers<[1], [0], [0], [1], [0, 0, 1, 1], [], []>} : vector<8x32xf32>, vector<32x32xf32>, vector<8x32xf32> -> vector<8x32xf32>
    %69 = arith.subf %30, %68 : vector<8x32xf32>
    %70 = vector.broadcast %36 : vector<8x1xf32> to vector<8x32xf32>
    %71 = arith.mulf %70, %69 : vector<8x32xf32>
    %cst_27 = arith.constant dense<0.000000e+00> : vector<8x32xf32>
    %72 = tpu.matmul %67, %71, %cst_27 {dimension_numbers = #tpu.dot_dimension_numbers<[1], [0], [0], [1], [0, 0, 1, 1], [], []>} : vector<8x8xf32>, vector<8x32xf32>, vector<8x32xf32> -> vector<8x32xf32>
    %cst_28 = arith.constant dense<0.000000e+00> : vector<8x8xf32>
    %73 = tpu.matmul %28, %53, %cst_28 {dimension_numbers = #tpu.dot_dimension_numbers<[1], [0], [0], [1], [0, 0, 1, 1], [], []>} : vector<8x32xf32>, vector<32x8xf32>, vector<8x8xf32> -> vector<8x8xf32>
    %cst_29 = arith.constant dense<0.000000e+00> : vector<8x32xf32>
    %74 = tpu.matmul %28, %52, %cst_29 {dimension_numbers = #tpu.dot_dimension_numbers<[1], [0], [0], [1], [0, 0, 1, 1], [], []>} : vector<8x32xf32>, vector<32x32xf32>, vector<8x32xf32> -> vector<8x32xf32>
    %cst_30 = arith.constant 0.000000e+00 : f32
    %75 = vector.broadcast %cst_30 : f32 to vector<8x8xf32>
    %76 = arith.select %48, %73, %75 : vector<8x8xi1>, vector<8x8xf32>
    %cst_31 = arith.constant dense<0.000000e+00> : vector<8x32xf32>
    %77 = tpu.matmul %76, %72, %cst_31 {dimension_numbers = #tpu.dot_dimension_numbers<[1], [0], [0], [1], [0, 0, 1, 1], [], []>} : vector<8x8xf32>, vector<8x32xf32>, vector<8x32xf32> -> vector<8x32xf32>
    %78 = arith.addf %74, %77 : vector<8x32xf32>
    %cst_32 = arith.constant dense<0.000000e+00> : vector<32x32xf32>
    %79 = tpu.matmul %53, %72, %cst_32 {dimension_numbers = #tpu.dot_dimension_numbers<[1], [0], [0], [1], [0, 0, 1, 1], [], []>} : vector<32x8xf32>, vector<8x32xf32>, vector<32x32xf32> -> vector<32x32xf32>
    %80 = arith.addf %52, %79 : vector<32x32xf32>
    %c0_33 = arith.constant 0 : index
    %c0_34 = arith.constant 0 : index
    %81 = vector.load %arg8[%c0_33, %c0_34] : memref<32x32xf32, #tpu.memory_space<vmem>>, vector<32x32xf32>
    tpu.vector_store %arg8[%c0_33, %c0_34], %80 {strides = array<i32>} : memref<32x32xf32, #tpu.memory_space<vmem>>, vector<32x32xf32>,
    %82 = arith.truncf %78 : vector<8x32xf32> to vector<8x32xbf16>
    %c0_35 = arith.constant 0 : index
    %c0_36 = arith.constant 0 : index
    %83 = vector.load %arg5[%c0_35, %c0_36] : memref<32x32xbf16, #tpu.memory_space<vmem>>, vector<32x32xbf16>
    %cst_37 = arith.constant dense<0.000000e+00> : vector<8x32xf32>
    %84 = tpu.matmul %82, %83, %cst_37 {dimension_numbers = #tpu.dot_dimension_numbers<[1], [0], [0], [1], [0, 0, 1, 1], [], []>} : vector<8x32xbf16>, vector<32x32xbf16>, vector<8x32xf32> -> vector<8x32xf32>
    %cst_38 = arith.constant dense<0.000000e+00> : vector<8xf32>
    %85 = vector.multi_reduction <add>, %84, %cst_38 [1] : vector<8x32xf32> to vector<8xf32>
    %86 = vector.shape_cast %85 : vector<8xf32> to vector<8x1xf32>
    %cst_39 = arith.constant 3.200000e+01 : f32
    %87 = vector.broadcast %cst_39 : f32 to vector<8x1xf32>
    %88 = arith.divf %86, %87 : vector<8x1xf32>
    %89 = vector.broadcast %88 : vector<8x1xf32> to vector<8x32xf32>
    %90 = arith.subf %84, %89 : vector<8x32xf32>
    %91 = arith.mulf %90, %90 : vector<8x32xf32>
    %cst_40 = arith.constant dense<0.000000e+00> : vector<8xf32>
    %92 = vector.multi_reduction <add>, %91, %cst_40 [1] : vector<8x32xf32> to vector<8xf32>
    %93 = vector.shape_cast %92 : vector<8xf32> to vector<8x1xf32>
    %cst_41 = arith.constant 3.200000e+01 : f32
    %94 = vector.broadcast %cst_41 : f32 to vector<8x1xf32>
    %95 = arith.divf %93, %94 : vector<8x1xf32>
    %cst_42 = arith.constant 9.99999974E-6 : f32
    %96 = vector.broadcast %cst_42 : f32 to vector<8x1xf32>
    %97 = arith.addf %95, %96 : vector<8x1xf32>
    %98 = math.rsqrt %97 : vector<8x1xf32>
    %99 = vector.broadcast %98 : vector<8x1xf32> to vector<8x32xf32>
    %100 = arith.mulf %90, %99 : vector<8x32xf32>
    %101 = vector.broadcast %6 : vector<1x32xf32> to vector<8x32xf32>
    %102 = arith.mulf %100, %101 : vector<8x32xf32>
    %c0_43 = arith.constant 0 : index
    %c0_44 = arith.constant 0 : index
    %c0_45 = arith.constant 0 : index
    %103 = vector.load %arg7[%c0_43, %c0_44, %c0_45] : memref<1x8x32xf32, #tpu.memory_space<vmem>>, vector<1x8x32xf32>
    %104 = vector.shape_cast %103 : vector<1x8x32xf32> to vector<8x32xf32>
    %105 = vector.shape_cast %102 : vector<8x32xf32> to vector<1x8x32xf32>
    tpu.vector_store %arg7[%c0_43, %c0_44, %c0_45], %105 {strides = array<i32>} : memref<1x8x32xf32, #tpu.memory_space<vmem>>, vector<1x8x32xf32>,
    return
  }
  func.func @transform_0(%arg0: i32, %arg1: i32) -> (i32, i32, i32) {
    %c0_i32 = arith.constant 0 : i32
    %c0_i32_0 = arith.constant 0 : i32
    return %arg0, %arg1, %c0_i32 : i32, i32, i32
  }
  func.func @transform_1(%arg0: i32, %arg1: i32) -> (i32, i32) {
    %c0_i32 = arith.constant 0 : i32
    %c0_i32_0 = arith.constant 0 : i32
    %c0_i32_1 = arith.constant 0 : i32
    return %c0_i32, %c0_i32_0 : i32, i32
  }
  func.func @transform_2(%arg0: i32, %arg1: i32) -> (i32, i32) {
    %c0_i32 = arith.constant 0 : i32
    %c0_i32_0 = arith.constant 0 : i32
    %c0_i32_1 = arith.constant 0 : i32
    return %c0_i32, %c0_i32_0 : i32, i32
  }
  func.func @transform_3(%arg0: i32, %arg1: i32) -> (i32, i32) {
    %c0_i32 = arith.constant 0 : i32
    %c0_i32_0 = arith.constant 0 : i32
    %c0_i32_1 = arith.constant 0 : i32
    return %c0_i32, %c0_i32_0 : i32, i32
  }
  func.func @transform_4(%arg0: i32, %arg1: i32) -> (i32, i32) {
    %c0_i32 = arith.constant 0 : i32
    %c0_i32_0 = arith.constant 0 : i32
    %c0_i32_1 = arith.constant 0 : i32
    return %c0_i32, %c0_i32_0 : i32, i32
  }
  func.func @transform_5(%arg0: i32, %arg1: i32) -> (i32, i32, i32) {
    %c0_i32 = arith.constant 0 : i32
    %c0_i32_0 = arith.constant 0 : i32
    return %arg0, %arg1, %c0_i32 : i32, i32, i32
  }
}

</mosaic_0001>

<llo_original>
// kernel: tpu_custom_call.1
$region0: #{tpu_custom_call.1}
  #allocation0 [shape = 'u32[]', space=smem, size = 0x4, offset = 0x4, fixed_abs, tag = 'smem constant byte address 0x4 - core index']
  #allocation1 [shape = 'u32[72,128]{1,0:T(1,128)}', space=vmem, size = 0x9000, scoped, tag = 'internal scratch']
  #allocation2 [shape = 'f32[32,32]{1,0:T(8,128)}', space=vmem, size = 0x4000, scoped, tag = 'scratch operand']
  %s0 = inlined_call_operand.hbm [shape: f32[2,8,32], index: 0, kind: input, shape index: {}]
  %s1 = inlined_call_operand.hbm [shape: f32[1,32], index: 1, kind: input, shape index: {}]
  %s2 = inlined_call_operand.hbm [shape: bf16[32,97], index: 2, kind: input, shape index: {}]
  %s3 = inlined_call_operand.hbm [shape: bf16[32,32], index: 3, kind: input, shape index: {}]
  %s4 = inlined_call_operand.vmem [shape: f32[1,32], index: 4, kind: input, shape index: {}]
  %s5 = inlined_call_operand.hbm [shape: f32[2,8,32], index: 5, kind: output, shape index: {}]
  %s6 = sld [smem:[#allocation0]]
  $region73: #{tpu_custom_call.1} parent=0
    _
  %s8 = ssub.s32 1, %s6
  %s9 = scalar_select 0, %s8, %s6
  $region1: #{tpu_custom_call.1} parent=0
    #allocation3 [shape = 'u8[8192]{0}', space=vmem, size = 0x2000, scoped, tag = 'input window, operand 0']
    #allocation4 [shape = 's32[2]{0}', space=sflag, size = 0x8, scoped, tag = 'scoped memory for tpu_custom_call.1']
    #allocation5 [shape = 's32[2]{0}', space=sflag, size = 0x8, scoped, tag = 'scoped memory for tpu_custom_call.1']
    #allocation6 [shape = 'u8[512]{0}', space=vmem, size = 0x400, scoped, tag = 'input window, operand 1, single buffered']
    #allocation7 [shape = 's32[1]{0}', space=sflag, size = 0x4, scoped, tag = 'scoped memory for tpu_custom_call.1']
    #allocation8 [shape = 'u8[8192]{0}', space=vmem, size = 0x2000, scoped, tag = 'input window, operand 2, single buffered']
    #allocation9 [shape = 'u8[8192]{0}', space=vmem, size = 0x2000, scoped, tag = 'input window, operand 3, single buffered']
    #allocation10 [shape = 's32[1]{0}', space=sflag, size = 0x4, scoped, tag = 'scoped memory for tpu_custom_call.1']
    #allocation11 [shape = 'u8[8192]{0}', space=vmem, size = 0x2000, scoped, tag = 'output window, operand 0']
    %10 = vsyncpa [#allocation4], 0
    %s11 = scalar_lea.sflag [#allocation4], 1
    %12 = vsyncpa %s11, 0
    %13 = vsyncpa [#allocation7], 0
    %14 = vsyncpa [#allocation10], 0
    %15 = vsyncpa [#allocation5], 0
    %s16 = scalar_lea.sflag [#allocation5], 1
    %17 = vsyncpa %s16, 0
    loop: start=0, step=1, limit=4
    $region2: #{tpu_custom_call.1} parent=1 // loop_pre_header
      _
    $region3: #{tpu_custom_call.1} parent=1 // loop_header
      %s19 = sphi 0, %s23
      %p20 = scmp.ge.s32.totalorder %s19, 4
      %s26 = sphi 0, %s38
      %s27 = sphi 0, %s34
      %s28 = sphi 0, %s26
      %s29 = sphi 0, %s27
      %s30 = sphi 0, %s28
      %s31 = sphi 0, %s29
      %s43 = sphi 0, %s45
      %s46 = sphi 0, %s43
      %s47 = sphi 0, %s46
      %s63 = sphi 0, %s47
      %s67 = sphi 0, %s67
      %s69 = sphi 0, %s67
      %s70 = sphi 0, %s69
      %s84 = sphi 0, %s70
      %s88 = sphi 0, %s88
      %s90 = sphi 0, %s88
      %s91 = sphi 0, %s90
      %s105 = sphi 0, %s91
      %s109 = sphi 0, %s109
      %s111 = sphi 0, %s109
      %s112 = sphi 0, %s111
      %s126 = sphi 0, %s112
      %s130 = sphi 0, %s130
      %s132 = sphi 0, %s130
      %s133 = sphi 0, %s132
      %s147 = sphi 0, %s133
      %s155 = sphi 0, %s157
      %s158 = sphi 0, %s155
      %s159 = sphi 0, %s158
      %s175 = sphi 0, %s159
    $region4: #{tpu_custom_call.1} parent=1 // loop_header_branch
      %22 = sbr.rel (%p20) target = $region8
    $region5: #{tpu_custom_call.1} parent=1 // loop_body
      %s24 = ssub.s32 %s19, 1
      %s25 = ssub.s32 %s19, 2
      %s32 = sadd.s32 1, %s27
      %p33 = scmp.ge.s32.totalorder %s32, 1
      %s34 = scalar_select %p33, 0, %s32
      %s35 = sadd.s32 1, %s26
      %s36 = scalar_select %p33, %s35, %s26
      %p37 = scmp.ge.s32.totalorder %s36, 2
      %s38 = scalar_select %p37, 0, %s36
      %s39 = ssub.s32 %s26, %s38
      %s40 = ssub.s32 %s27, %s34
      %s41 = sor.u32 %s39, %s40
      %p42 = scmp.eq.s32.totalorder %s41, 0
      %s44 = sadd.s32 %s43, 1
      %s45 = scalar_select %p42, %s43, %s44
      %p48 = pneg %p42
      %p49 = scmp.eq.s32.totalorder %s19, 1
      %p50 = por %p48, %p49
      %p51 = scmp.ne.s32.totalorder %s43, %s46
      %p52 = scmp.eq.s32.totalorder %s19, 0
      %p53 = por %p51, %p52
      %p54 = scmp.ne.s32.totalorder %s43, %s46
      %p55 = scmp.eq.s32.totalorder %s24, 1
      %p56 = por %p54, %p55
      %p57 = scmp.ne.s32.totalorder %s46, %s47
      %p58 = scmp.eq.s32.totalorder %s24, 0
      %p59 = por %p57, %p58
      %p60 = scmp.ne.s32.totalorder %s46, %s47
      %p61 = scmp.eq.s32.totalorder %s25, 1
      %p62 = por %p60, %p61
      %p64 = scmp.ne.s32.totalorder %s47, %s63
      %p65 = scmp.eq.s32.totalorder %s25, 0
      %p66 = por %p64, %p65
      %s68 = sadd.s32 %s67, 1
      %p71 = scmp.eq.s32.totalorder %s19, 1
      %p72 = scmp.ne.s32.totalorder %s67, %s69
      %p73 = scmp.eq.s32.totalorder %s19, 0
      %p74 = por %p72, %p73
      %p75 = scmp.ne.s32.totalorder %s67, %s69
      %p76 = scmp.eq.s32.totalorder %s24, 1
      %p77 = por %p75, %p76
      %p78 = scmp.ne.s32.totalorder %s69, %s70
      %p79 = scmp.eq.s32.totalorder %s24, 0
      %p80 = por %p78, %p79
      %p81 = scmp.ne.s32.totalorder %s69, %s70
      %p82 = scmp.eq.s32.totalorder %s25, 1
      %p83 = por %p81, %p82
      %p85 = scmp.ne.s32.totalorder %s70, %s84
      %p86 = scmp.eq.s32.totalorder %s25, 0
      %p87 = por %p85, %p86
      %s89 = sadd.s32 %s88, 1
      %p92 = scmp.eq.s32.totalorder %s19, 1
      %p93 = scmp.ne.s32.totalorder %s88, %s90
      %p94 = scmp.eq.s32.totalorder %s19, 0
      %p95 = por %p93, %p94
      %p96 = scmp.ne.s32.totalorder %s88, %s90
      %p97 = scmp.eq.s32.totalorder %s24, 1
      %p98 = por %p96, %p97
      %p99 = scmp.ne.s32.totalorder %s90, %s91
      %p100 = scmp.eq.s32.totalorder %s24, 0
      %p101 = por %p99, %p100
      %p102 = scmp.ne.s32.totalorder %s90, %s91
      %p103 = scmp.eq.s32.totalorder %s25, 1
      %p104 = por %p102, %p103
      %p106 = scmp.ne.s32.totalorder %s91, %s105
      %p107 = scmp.eq.s32.totalorder %s25, 0
      %p108 = por %p106, %p107
      %s110 = sadd.s32 %s109, 1
      %p113 = scmp.eq.s32.totalorder %s19, 1
      %p114 = scmp.ne.s32.totalorder %s109, %s111
      %p115 = scmp.eq.s32.totalorder %s19, 0
      %p116 = por %p114, %p115
      %p117 = scmp.ne.s32.totalorder %s109, %s111
      %p118 = scmp.eq.s32.totalorder %s24, 1
      %p119 = por %p117, %p118
      %p120 = scmp.ne.s32.totalorder %s111, %s112
      %p121 = scmp.eq.s32.totalorder %s24, 0
      %p122 = por %p120, %p121
      %p123 = scmp.ne.s32.totalorder %s111, %s112
      %p124 = scmp.eq.s32.totalorder %s25, 1
      %p125 = por %p123, %p124
      %p127 = scmp.ne.s32.totalorder %s112, %s126
      %p128 = scmp.eq.s32.totalorder %s25, 0
      %p129 = por %p127, %p128
      %s131 = sadd.s32 %s130, 1
      %p134 = scmp.eq.s32.totalorder %s19, 1
      %p135 = scmp.ne.s32.totalorder %s130, %s132
      %p136 = scmp.eq.s32.totalorder %s19, 0
      %p137 = por %p135, %p136
      %p138 = scmp.ne.s32.totalorder %s130, %s132
      %p139 = scmp.eq.s32.totalorder %s24, 1
      %p140 = por %p138, %p139
      %p141 = scmp.ne.s32.totalorder %s132, %s133
      %p142 = scmp.eq.s32.totalorder %s24, 0
      %p143 = por %p141, %p142
      %p144 = scmp.ne.s32.totalorder %s132, %s133
      %p145 = scmp.eq.s32.totalorder %s25, 1
      %p146 = por %p144, %p145
      %p148 = scmp.ne.s32.totalorder %s133, %s147
      %p149 = scmp.eq.s32.totalorder %s25, 0
      %p150 = por %p148, %p149
      %s151 = ssub.s32 %s26, %s38
      %s152 = ssub.s32 %s27, %s34
      %s153 = sor.u32 %s151, %s152
      %p154 = scmp.eq.s32.totalorder %s153, 0
      %s156 = sadd.s32 %s155, 1
      %s157 = scalar_select %p154, %s155, %s156
      %p160 = pneg %p154
      %p161 = scmp.eq.s32.totalorder %s19, 1
      %p162 = por %p160, %p161
      %p163 = scmp.ne.s32.totalorder %s155, %s158
      %p164 = scmp.eq.s32.totalorder %s19, 0
      %p165 = por %p163, %p164
      %p166 = scmp.ne.s32.totalorder %s155, %s158
      %p167 = scmp.eq.s32.totalorder %s24, 1
      %p168 = por %p166, %p167
      %p169 = scmp.ne.s32.totalorder %s158, %s159
      %p170 = scmp.eq.s32.totalorder %s24, 0
      %p171 = por %p169, %p170
      %p172 = scmp.ne.s32.totalorder %s158, %s159
      %p173 = scmp.eq.s32.totalorder %s25, 1
      %p174 = por %p172, %p173
      %p176 = scmp.ne.s32.totalorder %s159, %s175
      %p177 = scmp.eq.s32.totalorder %s25, 0
      %p178 = por %p176, %p177
      %p179 = scmp.le.s32.totalorder 1, %s19
      %p180 = scmp.lt.s32.totalorder %s19, 3
      %p181 = pnand %p179, %p180
      %p182 = pneg %p181
      // Predicated region
      $region9: #{tpu_custom_call.1} parent=5 // pred_check
        _
      $region10: #{tpu_custom_call.1} parent=5 // pred_check_branch
        %184 = sbr.rel (%p181) target = $region12
      $region11: #{tpu_custom_call.1} parent=5 // pred_region
        %s185 = ssub.s32 %s19, 1
        // Predicated region
        $region13: #{tpu_custom_call.1} parent=11 // pred_check
          %p186 = pneg %p80
        $region14: #{tpu_custom_call.1} parent=11 // pred_check_branch
          %188 = sbr.rel (%p186) target = $region16
        $region15: #{tpu_custom_call.1} parent=11 // pred_region
          %190 = vsyncadd [#allocation7], 0
          %s192 = sshll.u32 %s1, 4
          %s193 = int_to_ptr.hbm [resolvable:$true] %s192
          %s194 = sshll.u32 [#allocation6], 4
          %s195 = int_to_ptr.vmem [resolvable:$true] %s194
          %197 = dma.hbm_to_vmem [thread:$0]  %s193, 16, %s195, [#allocation7]
        $region16: #{tpu_custom_call.1} parent=11 // pred_fallthru
          _
        // Predicated region
        $region17: #{tpu_custom_call.1} parent=11 // pred_check
          %p198 = pneg %p101
        $region18: #{tpu_custom_call.1} parent=11 // pred_check_branch
          %200 = sbr.rel (%p198) target = $region20
        $region19: #{tpu_custom_call.1} parent=11 // pred_region
          %202 = vsyncadd [#allocation7], 0
          %s203 = sshll.u32 %s2, 4
          %s204 = int_to_ptr.hbm [resolvable:$true] %s203
          %s205 = sshll.u32 [#allocation8], 4
          %s206 = int_to_ptr.vmem [resolvable:$true] %s205
          %211 = dma.hbm_to_vmem [thread:$0]  %s204, 256, %s206, [#allocation7], 64, 64, 4
        $region20: #{tpu_custom_call.1} parent=11 // pred_fallthru
          _
        // Predicated region
        $region21: #{tpu_custom_call.1} parent=11 // pred_check
          %p212 = pneg %p122
        $region22: #{tpu_custom_call.1} parent=11 // pred_check_branch
          %214 = sbr.rel (%p212) target = $region24
        $region23: #{tpu_custom_call.1} parent=11 // pred_region
          %216 = vsyncadd [#allocation10], 0
          %s217 = sshll.u32 %s3, 4
          %s218 = int_to_ptr.hbm [resolvable:$true] %s217
          %s219 = sshll.u32 [#allocation9], 4
          %s220 = int_to_ptr.vmem [resolvable:$true] %s219
          %225 = dma.hbm_to_vmem [thread:$0]  %s218, 256, %s220, [#allocation10], 64, 64, 4
        $region24: #{tpu_custom_call.1} parent=11 // pred_fallthru
          _
        // Predicated region
        $region25: #{tpu_custom_call.1} parent=11 // pred_check
          %p226 = pneg %p143
        $region26: #{tpu_custom_call.1} parent=11 // pred_check_branch
          %228 = sbr.rel (%p226) target = $region28
        $region27: #{tpu_custom_call.1} parent=11 // pred_region
          _
        $region28: #{tpu_custom_call.1} parent=11 // pred_fallthru
          _
      $region12: #{tpu_custom_call.1} parent=5 // pred_fallthru
        _
      %p229 = scmp.lt.s32.totalorder %s19, 2
      // Predicated region
      $region29: #{tpu_custom_call.1} parent=5 // pred_check
        %p230 = pneg %p229
      $region30: #{tpu_custom_call.1} parent=5 // pred_check_branch
        %232 = sbr.rel (%p230) target = $region32
      $region31: #{tpu_custom_call.1} parent=5 // pred_region
        // Predicated region
        $region33: #{tpu_custom_call.1} parent=31 // pred_check
          %p233 = pneg %p53
        $region34: #{tpu_custom_call.1} parent=31 // pred_check_branch
          %235 = sbr.rel (%p233) target = $region36
        $region35: #{tpu_custom_call.1} parent=31 // pred_region
          %s236 = sand.u32 %s43, 1
          %s237 = scalar_lea.sflag [#allocation4], %s236
          %s238 = sand.u32 %s43, 1
          %s239 = smul.addr %s238, 8
          %s240 = scalar_lea.vmem [#allocation3], %s239
          %242 = vsyncadd %s237, 0
          %s243 = sadd.s32 %s27, %s26
          %s244 = smul.addr %s243, 8
          %s245 = scalar_lea.hbm %s0, %s244
          %s247 = sshll.u32 %s245, 4
          %s248 = int_to_ptr.hbm [resolvable:$true] %s247
          %s249 = sshll.u32 %s240, 4
          %s250 = int_to_ptr.vmem [resolvable:$true] %s249
          %252 = dma.hbm_to_vmem [thread:$0]  %s248, 128, %s250, %s237
        $region36: #{tpu_custom_call.1} parent=31 // pred_fallthru
          _
      $region32: #{tpu_custom_call.1} parent=5 // pred_fallthru
        _
      %p253 = scmp.le.s32.totalorder 1, %s19
      %p254 = scmp.lt.s32.totalorder %s19, 3
      %p255 = pnand %p253, %p254
      %p256 = pneg %p255
      // Predicated region
      $region37: #{tpu_custom_call.1} parent=5 // pred_check
        _
      $region38: #{tpu_custom_call.1} parent=5 // pred_check_branch
        %258 = sbr.rel (%p255) target = $region40
      $region39: #{tpu_custom_call.1} parent=5 // pred_region
        %s259 = ssub.s32 %s19, 1
        %s260 = sand.u32 %s46, 1
        %s261 = scalar_lea.sflag [#allocation4], %s260
        %s262 = sand.u32 %s46, 1
        %s263 = smul.addr %s262, 8
        %s264 = scalar_lea.vmem [#allocation3], %s263
        // Predicated region
        $region41: #{tpu_custom_call.1} parent=39 // pred_check
          %p265 = pneg %p59
        $region42: #{tpu_custom_call.1} parent=39 // pred_check_branch
          %267 = sbr.rel (%p265) target = $region44
        $region43: #{tpu_custom_call.1} parent=39 // pred_region
          %269 = dma.done %s261, 128
        $region44: #{tpu_custom_call.1} parent=39 // pred_fallthru
          _
        // Predicated region
        $region45: #{tpu_custom_call.1} parent=39 // pred_check
          %p270 = pneg %p80
        $region46: #{tpu_custom_call.1} parent=39 // pred_check_branch
          %272 = sbr.rel (%p270) target = $region48
        $region47: #{tpu_custom_call.1} parent=39 // pred_region
          %274 = dma.done [#allocation7], 16
        $region48: #{tpu_custom_call.1} parent=39 // pred_fallthru
          _
        // Predicated region
        $region49: #{tpu_custom_call.1} parent=39 // pred_check
          %p275 = pneg %p101
        $region50: #{tpu_custom_call.1} parent=39 // pred_check_branch
          %277 = sbr.rel (%p275) target = $region52
        $region51: #{tpu_custom_call.1} parent=39 // pred_region
          %279 = dma.done [#allocation7], 256
        $region52: #{tpu_custom_call.1} parent=39 // pred_fallthru
          _
        // Predicated region
        $region53: #{tpu_custom_call.1} parent=39 // pred_check
          %p280 = pneg %p122
        $region54: #{tpu_custom_call.1} parent=39 // pred_check_branch
          %282 = sbr.rel (%p280) target = $region56
        $region55: #{tpu_custom_call.1} parent=39 // pred_region
          %284 = dma.done [#allocation10], 256
        $region56: #{tpu_custom_call.1} parent=39 // pred_fallthru
          _
        %s285 = sand.u32 %s46, 1
        %s286 = scalar_lea.sflag [#allocation4], %s285
        %s287 = sand.u32 %s46, 1
        %s288 = smul.addr %s287, 8
        %s289 = scalar_lea.vmem [#allocation3], %s288
        %p290 = pneg %p59
        %p291 = pneg %p56
        %p292 = pneg %p80
        %p293 = pneg %p77
        %p294 = pneg %p101
        %p295 = pneg %p98
        %p296 = pneg %p122
        %p297 = pneg %p119
        %p298 = pneg %p143
        %p299 = pneg %p140
        %p300 = pneg %p171
        %p301 = pneg %p168
        %s302 = sand.u32 %s158, 1
        %s303 = scalar_lea.sflag [#allocation5], %s302
        %s304 = sand.u32 %s158, 1
        %s305 = smul.addr %s304, 8
        %s306 = scalar_lea.vmem [#allocation11], %s305
        %p308 = scmp.eq.s32.totalorder %s29, 0
        // Predicated region
        $region57: #{tpu_custom_call.1} parent=39 // pred_check
          %p309 = pneg %p308
        $region58: #{tpu_custom_call.1} parent=39 // pred_check_branch
          %311 = sbr.rel (%p309) target = $region60
        $region59: #{tpu_custom_call.1} parent=39 // pred_region
          %vm312 = vcmask 261120
          %313 = vst.msk [vmem:[#allocation2] sm:$0xff] %vm312, 0.0
          %314 = vst.msk [vmem:[#allocation2 + $0x8] sm:$0xff] %vm312, 0.0
          %315 = vst.msk [vmem:[#allocation2 + $0x10] sm:$0xff] %vm312, 0.0
          %316 = vst.msk [vmem:[#allocation2 + $0x18] sm:$0xff] %vm312, 0.0
        $region60: #{tpu_custom_call.1} parent=39 // pred_fallthru
          _
        %v317 = vld [vmem:[%s264] sm:$0xff]
        %v318 = vld [vmem:[#allocation6] sm:$0x1]
        %v319 = vld [vmem:[%s4] sm:$0x1]
        %vm320 = vcmask 261120
        %v321 = vsel %vm320, %v317, 0.0
        %322 = vadd.xlane.f32.xlu0 %v321
        %v323 = vpop.xlane.xlu0 %322
        %v324 = vrcp.pop 32.0
        %v325 = vmul.f32 32.0, %v324
        %v326 = vsub.f32 1.0, %v325
        %v327 = vmul.f32 %v324, %v326
        %v328 = vadd.f32 %v324, %v327
        %vm329 = vweird.f32 %v324
        %v330 = vsel %vm329, %v324, %v328
        %v331 = vmul.f32 %v323, %v330
        %v332 = vsub.f32 %v317, %v331
        %v333 = vmul.f32 %v332, %v332
        %v334 = vsel %vm320, %v333, 0.0
        %335 = vadd.xlane.f32.xlu0 %v334
        %v336 = vpop.xlane.xlu0 %335
        %v337 = vmul.f32 %v336, %v330
        %v338 = vadd.f32 %v337, 1e-05
        %v339 = vrsqrt.pop %v338
        %v340 = vmul.f32 %v339, %v338
        %v341 = vmul.f32 %v340, %v339
        %v342 = vmul.f32 0.5, %v341
        %v343 = vsub.f32 1.5, %v342
        %v344 = vmul.f32 %v339, %v343
        %vm345 = vweird.f32 %v338
        %vm346 = vweird.f32 %v339
        %vm347 = vmor %vm345, %vm346
        %v348 = vsel %vm347, %v339, %v344
        %v349 = vmul.f32 %v332, %v348
        %v351 = vperm.slane %v318, 0
        %v353 = vmul.f32 %v349, %v351
        %v354 = vpack.c.bf16 %v353, %v353
        %v355 = vld [vmem:[#allocation8] sm:$0xf]
        %v356 = vld [vmem:[#allocation8 + $0x4] sm:$0xf]
        %v357 = vld [vmem:[#allocation8 + $0x8] sm:$0xf]
        %v358 = vld [vmem:[#allocation8 + $0xc] sm:$0xf]
        %v363 = vunpack.c.l.b16 %v355
        %v364 = vunpack.c.l.b16 %v356
        %v365 = vunpack.c.l.b16 %v357
        %v366 = vunpack.c.l.b16 %v358
        %v367 = vpack.c.b16 %v364, %v363
        %v368 = vpack.c.b16 %v366, %v365
        %v372 = vsel %vm320, %v354, 0
        %374 = vmatpush.bf16.msra.mxu0 0
        %375 = vmatpush.bf16.msra.mxu0 0
        %376 = vmatpush.bf16.msra.mxu0 0
        %377 = vmatpush.bf16.msra.mxu0 0
        %378 = vmatpush.bf16.msra.mxu0 0
        %379 = vmatpush.bf16.msra.mxu0 0
        %380 = vmatpush.bf16.msra.mxu0 %v368
        %381 = vmatpush.bf16.msra.mxu0 %v367
        %382 = vmatmul.bf16.gmra.mxu0 %v372
        %v383 = vpop.f32.mrf.mxu0
        %v384 = vadd.f32 0.0, %v383
        %v385 = vpop.f32.mrf.mxu0
        %386 = vdwg.mxu0
        %v387 = vxor.u32 %v384, 2147483648
        %v388 = vmul.f32 %v387, 1.442695
        %v389 = vpow.pop %v388
        %v390 = vadd.f32 %v389, 1.0
        %v391 = vrcp.pop %v390
        %v392 = vmul.f32 %v390, %v391
        %v393 = vsub.f32 1.0, %v392
        %v394 = vmul.f32 %v391, %v393
        %v395 = vadd.f32 %v391, %v394
        %vm396 = vweird.f32 %v390
        %vm397 = vweird.f32 %v391
        %vm398 = vmor %vm396, %vm397
        %v399 = vsel %vm398, %v391, %v395
        %v400 = vand.u32 2147483647, %v390
        %vm401 = vcmp.eq.f32.partialorder %v400, 8.507059e+37
        %v402 = vand.u32 %v390, 2147483648
        %v403 = vor.u32 1.1754944e-38, %v402
        %v404 = vsel %vm401, %v403, %v399
        %v405 = vmul.f32 1.0, %v404
        %v406 = vmul.f32 %v384, %v384
        %408 = vrot.lane.b32.xlu0 %v406, 96
        %v409 = vpop.permute.xlu0 %408
        %v411 = vsel %vm320, %v409, 0.0
        %412 = vadd.xlane.f32.xlu0 %v411
        %v413 = vpop.xlane.xlu0 %412
        %v414 = vadd.f32 %v413, 1e-06
        %v415 = vrsqrt.pop %v414
        %v416 = vmul.f32 %v415, %v414
        %v417 = vmul.f32 %v416, %v415
        %v418 = vmul.f32 0.5, %v417
        %v419 = vsub.f32 1.5, %v418
        %v420 = vmul.f32 %v415, %v419
        %vm421 = vweird.f32 %v414
        %vm422 = vweird.f32 %v415
        %vm423 = vmor %vm421, %vm422
        %v424 = vsel %vm423, %v415, %v420
        %v425 = vmul.f32 %v384, %v424
        %v426 = vlaneseq
        %v427 = vshrl.u32 %v426, 7
        %v428 = vlaneseq
        %v429 = vand.u32 %v428, 127
        %vm430 = vcmp.lt.s32.totalorder %v429, %v427
        %vm431 = vcmp.le.s32.totalorder %v429, %v427
        %vm432 = vcmp.eq.s32.totalorder %v427, %v429
        %v433 = vsel %vm432, 1, 0
        %v434 = vcvt.s32.f32 %v433
        %v435 = vld [vmem:[#allocation2] sm:$0xff]
        %v436 = vld [vmem:[#allocation2 + $0x8] sm:$0xff]
        %v437 = vld [vmem:[#allocation2 + $0x10] sm:$0xff]
        %v438 = vld [vmem:[#allocation2 + $0x18] sm:$0xff]
        %440 = vrot.lane.b32.xlu0 %v425, 96
        %v441 = vpop.permute.xlu0 %440
        %443 = vxpose.xlu0.b32.start [1/16] %v441, 128
        %444 = vxpose.xlu0.b32.cont [2/16] 0.0, 128
        %445 = vxpose.xlu0.b32.cont [3/16] 0.0, 128
        %446 = vxpose.xlu0.b32.cont [4/16] 0.0, 128
        %447 = vxpose.xlu0.b32.cont [5/16] 0.0, 128
        %448 = vxpose.xlu0.b32.cont [6/16] 0.0, 128
        %449 = vxpose.xlu0.b32.cont [7/16] 0.0, 128
        %450 = vxpose.xlu0.b32.cont [8/16] 0.0, 128
        %451 = vxpose.xlu0.b32.cont [9/16] 0.0, 128
        %452 = vxpose.xlu0.b32.cont [10/16] 0.0, 128
        %453 = vxpose.xlu0.b32.cont [11/16] 0.0, 128
        %454 = vxpose.xlu0.b32.cont [12/16] 0.0, 128
        %455 = vxpose.xlu0.b32.cont [13/16] 0.0, 128
        %456 = vxpose.xlu0.b32.cont [14/16] 0.0, 128
        %457 = vxpose.xlu0.b32.cont [15/16] 0.0, 128
        %458 = vxpose.xlu0.b32.end [16/16] 0.0, 128
        %v459 = vpop.trf.xlu0
        %v460 = vpop.trf.xlu0
        %v461 = vpop.trf.xlu0
        %v462 = vpop.trf.xlu0
        %v463 = vpop.trf.xlu0
        %v464 = vpop.trf.xlu0
        %v465 = vpop.trf.xlu0
        %v466 = vpop.trf.xlu0
        %v467 = vpop.trf.xlu0
        %v468 = vpop.trf.xlu0
        %v469 = vpop.trf.xlu0
        %v470 = vpop.trf.xlu0
        %v471 = vpop.trf.xlu0
        %v472 = vpop.trf.xlu0
        %v473 = vpop.trf.xlu0
        %v474 = vpop.trf.xlu0
        %v475 = vsel %vm320, %v441, 0
        %477 = vmatpush.msra.mxu0 0.0
        %478 = vmatpush.msra.mxu0 0.0
        %479 = vmatpush.msra.mxu0 0.0
        %480 = vmatpush.msra.mxu0 0.0
        %481 = vmatpush.msra.mxu0 0.0
        %482 = vmatpush.msra.mxu0 0.0
        %483 = vmatpush.msra.mxu0 0.0
        %484 = vmatpush.msra.mxu0 0.0
        %485 = vmatpush.msra.mxu0 0.0
        %486 = vmatpush.msra.mxu0 0.0
        %487 = vmatpush.msra.mxu0 0.0
        %488 = vmatpush.msra.mxu0 0.0
        %489 = vmatpush.msra.mxu0 %v462
        %490 = vmatpush.msra.mxu0 %v461
        %491 = vmatpush.msra.mxu0 %v460
        %492 = vmatpush.msra.mxu0 %v459
        %493 = vmatmul.f32.gmra.mxu0 %v475
        %v494 = vpop.f32.mrf.mxu0
        %v495 = vadd.f32 0.0, %v494
        %496 = vdwg.mxu0
        %498 = vset.pattern.permute.xlu0 96
        %499 = vperm.xlu0 %498, %v405
        %v500 = vpop.permute.xlu0 %499
        %v502 = vmul.f32 %v500, %v495
        %v503 = vsub.f32 0.0, %v502
        %v504 = vsel %vm430, %v503, 0.0
        %v505 = vadd.f32 %v434, %v504
        %vm506 = vcmask 64512
        %v508 = vsel %vm506, %v504, 0
        %510 = vmatpush.msra.mxu0 0.0
        %511 = vmatpush.msra.mxu0 0.0
        %512 = vmatpush.msra.mxu0 0.0
        %513 = vmatpush.msra.mxu0 0.0
        %514 = vmatpush.msra.mxu0 0.0
        %515 = vmatpush.msra.mxu0 0.0
        %516 = vmatpush.msra.mxu0 0.0
        %517 = vmatpush.msra.mxu0 0.0
        %518 = vmatpush.msra.mxu0 0.0
        %519 = vmatpush.msra.mxu0 0.0
        %520 = vmatpush.msra.mxu0 0.0
        %521 = vmatpush.msra.mxu0 0.0
        %522 = vmatpush.msra.mxu0 0.0
        %523 = vmatpush.msra.mxu0 0.0
        %524 = vmatpush.msra.mxu0 0.0
        %525 = vmatpush.msra.mxu0 %v504
        %526 = vmatmul.f32.gmra.mxu0 %v508
        %v527 = vpop.f32.mrf.mxu0
        %v528 = vadd.f32 0.0, %v527
        %529 = vdwg.mxu0
        %v531 = vsel %vm506, %v505, 0
        %533 = vmatpush.msra.mxu0 0.0
        %534 = vmatpush.msra.mxu0 0.0
        %535 = vmatpush.msra.mxu0 0.0
        %536 = vmatpush.msra.mxu0 0.0
        %537 = vmatpush.msra.mxu0 0.0
        %538 = vmatpush.msra.mxu0 0.0
        %539 = vmatpush.msra.mxu0 0.0
        %540 = vmatpush.msra.mxu0 0.0
        %541 = vmatpush.msra.mxu0 0.0
        %542 = vmatpush.msra.mxu0 0.0
        %543 = vmatpush.msra.mxu0 0.0
        %544 = vmatpush.msra.mxu0 0.0
        %545 = vmatpush.msra.mxu0 0.0
        %546 = vmatpush.msra.mxu0 0.0
        %547 = vmatpush.msra.mxu0 0.0
        %548 = vmatpush.msra.mxu0 %v528
        %549 = vmatmul.f32.gmra.mxu0 %v531
        %v550 = vpop.f32.mrf.mxu0
        %v551 = vadd.f32 0.0, %v550
        %552 = vdwg.mxu0
        %v553 = vadd.f32 %v505, %v551
        %v555 = vsel %vm506, %v528, 0
        %557 = vmatpush.msra.mxu0 0.0
        %558 = vmatpush.msra.mxu0 0.0
        %559 = vmatpush.msra.mxu0 0.0
        %560 = vmatpush.msra.mxu0 0.0
        %561 = vmatpush.msra.mxu0 0.0
        %562 = vmatpush.msra.mxu0 0.0
        %563 = vmatpush.msra.mxu0 0.0
        %564 = vmatpush.msra.mxu0 0.0
        %565 = vmatpush.msra.mxu0 0.0
        %566 = vmatpush.msra.mxu0 0.0
        %567 = vmatpush.msra.mxu0 0.0
        %568 = vmatpush.msra.mxu0 0.0
        %569 = vmatpush.msra.mxu0 0.0
        %570 = vmatpush.msra.mxu0 0.0
        %571 = vmatpush.msra.mxu0 0.0
        %572 = vmatpush.msra.mxu0 %v528
        %573 = vmatmul.f32.gmra.mxu0 %v555
        %v574 = vpop.f32.mrf.mxu0
        %v575 = vadd.f32 0.0, %v574
        %576 = vdwg.mxu0
        %v578 = vsel %vm506, %v553, 0
        %580 = vmatpush.msra.mxu0 0.0
        %581 = vmatpush.msra.mxu0 0.0
        %582 = vmatpush.msra.mxu0 0.0
        %583 = vmatpush.msra.mxu0 0.0
        %584 = vmatpush.msra.mxu0 0.0
        %585 = vmatpush.msra.mxu0 0.0
        %586 = vmatpush.msra.mxu0 0.0
        %587 = vmatpush.msra.mxu0 0.0
        %588 = vmatpush.msra.mxu0 0.0
        %589 = vmatpush.msra.mxu0 0.0
        %590 = vmatpush.msra.mxu0 0.0
        %591 = vmatpush.msra.mxu0 0.0
        %592 = vmatpush.msra.mxu0 0.0
        %593 = vmatpush.msra.mxu0 0.0
        %594 = vmatpush.msra.mxu0 0.0
        %595 = vmatpush.msra.mxu0 %v575
        %596 = vmatmul.f32.gmra.mxu0 %v578
        %v597 = vpop.f32.mrf.mxu0
        %v598 = vadd.f32 0.0, %v597
        %599 = vdwg.mxu0
        %v600 = vadd.f32 %v553, %v598
        %601 = vmatpush.msra.mxu0 0.0
        %602 = vmatpush.msra.mxu0 0.0
        %603 = vmatpush.msra.mxu0 0.0
        %604 = vmatpush.msra.mxu0 0.0
        %605 = vmatpush.msra.mxu0 0.0
        %606 = vmatpush.msra.mxu0 0.0
        %607 = vmatpush.msra.mxu0 0.0
        %608 = vmatpush.msra.mxu0 0.0
        %609 = vmatpush.msra.mxu0 0.0
        %610 = vmatpush.msra.mxu0 0.0
        %611 = vmatpush.msra.mxu0 0.0
        %612 = vmatpush.msra.mxu0 0.0
        %613 = vmatpush.msra.mxu0 %v438
        %614 = vmatpush.msra.mxu0 %v437
        %615 = vmatpush.msra.mxu0 %v436
        %616 = vmatpush.msra.mxu0 %v435
        %617 = vmatmul.f32.gmra.mxu0 %v475
        %v618 = vpop.f32.mrf.mxu0
        %v619 = vadd.f32 0.0, %v618
        %620 = vdwg.mxu0
        %622 = vrot.lane.b32.xlu0 %v619, 64
        %v623 = vpop.permute.xlu0 %622
        %v625 = vsub.f32 %v384, %v623
        %v626 = vmul.f32 %v500, %v625
        %628 = vrot.lane.b32.xlu0 %v626, 64
        %v629 = vpop.permute.xlu0 %628
        %v632 = vsel %vm506, %v600, 0
        %634 = vmatpush.msra.mxu0 0.0
        %635 = vmatpush.msra.mxu0 0.0
        %636 = vmatpush.msra.mxu0 0.0
        %637 = vmatpush.msra.mxu0 0.0
        %638 = vmatpush.msra.mxu0 0.0
        %639 = vmatpush.msra.mxu0 0.0
        %640 = vmatpush.msra.mxu0 0.0
        %641 = vmatpush.msra.mxu0 0.0
        %642 = vmatpush.msra.mxu0 0.0
        %643 = vmatpush.msra.mxu0 0.0
        %644 = vmatpush.msra.mxu0 0.0
        %645 = vmatpush.msra.mxu0 0.0
        %646 = vmatpush.msra.mxu0 0.0
        %647 = vmatpush.msra.mxu0 0.0
        %648 = vmatpush.msra.mxu0 0.0
        %649 = vmatpush.msra.mxu0 %v629
        %650 = vmatmul.f32.gmra.mxu0 %v632
        %v651 = vpop.f32.mrf.mxu0
        %v652 = vadd.f32 0.0, %v651
        %653 = vdwg.mxu0
        %v655 = vsel %vm320, %v384, 0
        %657 = vmatpush.msra.mxu0 0.0
        %658 = vmatpush.msra.mxu0 0.0
        %659 = vmatpush.msra.mxu0 0.0
        %660 = vmatpush.msra.mxu0 0.0
        %661 = vmatpush.msra.mxu0 0.0
        %662 = vmatpush.msra.mxu0 0.0
        %663 = vmatpush.msra.mxu0 0.0
        %664 = vmatpush.msra.mxu0 0.0
        %665 = vmatpush.msra.mxu0 0.0
        %666 = vmatpush.msra.mxu0 0.0
        %667 = vmatpush.msra.mxu0 0.0
        %668 = vmatpush.msra.mxu0 0.0
        %669 = vmatpush.msra.mxu0 %v462
        %670 = vmatpush.msra.mxu0 %v461
        %671 = vmatpush.msra.mxu0 %v460
        %672 = vmatpush.msra.mxu0 %v459
        %673 = vmatmul.f32.gmra.mxu0 %v655
        %v674 = vpop.f32.mrf.mxu0
        %v675 = vadd.f32 0.0, %v674
        %676 = vdwg.mxu0
        %v677 = vsel %vm431, %v675, 0.0
        %v679 = vsel %vm506, %v677, 0
        %681 = vmatpush.msra.mxu0 0.0
        %682 = vmatpush.msra.mxu0 0.0
        %683 = vmatpush.msra.mxu0 0.0
        %684 = vmatpush.msra.mxu0 0.0
        %685 = vmatpush.msra.mxu0 0.0
        %686 = vmatpush.msra.mxu0 0.0
        %687 = vmatpush.msra.mxu0 0.0
        %688 = vmatpush.msra.mxu0 0.0
        %689 = vmatpush.msra.mxu0 0.0
        %690 = vmatpush.msra.mxu0 0.0
        %691 = vmatpush.msra.mxu0 0.0
        %692 = vmatpush.msra.mxu0 0.0
        %693 = vmatpush.msra.mxu0 0.0
        %694 = vmatpush.msra.mxu0 0.0
        %695 = vmatpush.msra.mxu0 0.0
        %696 = vmatpush.msra.mxu0 %v652
        %697 = vmatmul.f32.gmra.mxu0 %v679
        %v698 = vpop.f32.mrf.mxu0
        %v699 = vadd.f32 0.0, %v698
        %700 = vdwg.mxu0
        %701 = vmatpush.msra.mxu0 0.0
        %702 = vmatpush.msra.mxu0 0.0
        %703 = vmatpush.msra.mxu0 0.0
        %704 = vmatpush.msra.mxu0 0.0
        %705 = vmatpush.msra.mxu0 0.0
        %706 = vmatpush.msra.mxu0 0.0
        %707 = vmatpush.msra.mxu0 0.0
        %708 = vmatpush.msra.mxu0 0.0
        %709 = vmatpush.msra.mxu0 0.0
        %710 = vmatpush.msra.mxu0 0.0
        %711 = vmatpush.msra.mxu0 0.0
        %712 = vmatpush.msra.mxu0 0.0
        %713 = vmatpush.msra.mxu0 %v438
        %714 = vmatpush.msra.mxu0 %v437
        %715 = vmatpush.msra.mxu0 %v436
        %716 = vmatpush.msra.mxu0 %v435
        %717 = vmatmul.f32.gmra.mxu0 %v655
        %v718 = vpop.f32.mrf.mxu0
        %v719 = vadd.f32 %v699, %v718
        %720 = vdwg.mxu0
        %v722 = vsel %vm506, %v459, 0
        %v725 = vsel %vm506, %v460, 0
        %v728 = vsel %vm506, %v461, 0
        %v731 = vsel %vm506, %v462, 0
        %733 = vmatpush.msra.mxu0 0.0
        %734 = vmatpush.msra.mxu0 0.0
        %735 = vmatpush.msra.mxu0 0.0
        %736 = vmatpush.msra.mxu0 0.0
        %737 = vmatpush.msra.mxu0 0.0
        %738 = vmatpush.msra.mxu0 0.0
        %739 = vmatpush.msra.mxu0 0.0
        %740 = vmatpush.msra.mxu0 0.0
        %741 = vmatpush.msra.mxu0 0.0
        %742 = vmatpush.msra.mxu0 0.0
        %743 = vmatpush.msra.mxu0 0.0
        %744 = vmatpush.msra.mxu0 0.0
        %745 = vmatpush.msra.mxu0 0.0
        %746 = vmatpush.msra.mxu0 0.0
        %747 = vmatpush.msra.mxu0 0.0
        %748 = vmatpush.msra.mxu0 %v652
        %749 = vmatmul.f32.gmra.mxu0 %v722
        %v750 = vpop.f32.mrf.mxu0
        %v751 = vadd.f32 0.0, %v750
        %752 = vmatmul.f32.gmra.mxu0 %v725
        %v753 = vpop.f32.mrf.mxu0
        %v754 = vadd.f32 0.0, %v753
        %755 = vmatmul.f32.gmra.mxu0 %v728
        %v756 = vpop.f32.mrf.mxu0
        %v757 = vadd.f32 0.0, %v756
        %758 = vmatmul.f32.gmra.mxu0 %v731
        %v759 = vpop.f32.mrf.mxu0
        %v760 = vadd.f32 0.0, %v759
        %761 = vdwg.mxu0
        %v762 = vadd.f32 %v435, %v751
        %v763 = vadd.f32 %v436, %v754
        %v764 = vadd.f32 %v437, %v757
        %v765 = vadd.f32 %v438, %v760
        %766 = vst.msk [vmem:[#allocation2] sm:$0xff] %vm320, %v762
        %767 = vst.msk [vmem:[#allocation2 + $0x8] sm:$0xff] %vm320, %v763
        %768 = vst.msk [vmem:[#allocation2 + $0x10] sm:$0xff] %vm320, %v764
        %769 = vst.msk [vmem:[#allocation2 + $0x18] sm:$0xff] %vm320, %v765
        %v770 = vpack.c.bf16 %v719, %v719
        %v771 = vld [vmem:[#allocation9] sm:$0xf]
        %v772 = vld [vmem:[#allocation9 + $0x4] sm:$0xf]
        %v773 = vld [vmem:[#allocation9 + $0x8] sm:$0xf]
        %v774 = vld [vmem:[#allocation9 + $0xc] sm:$0xf]
        %v779 = vunpack.c.l.b16 %v771
        %v780 = vunpack.c.l.b16 %v772
        %v781 = vunpack.c.l.b16 %v773
        %v782 = vunpack.c.l.b16 %v774
        %v783 = vpack.c.b16 %v780, %v779
        %v784 = vpack.c.b16 %v782, %v781
        %v788 = vsel %vm320, %v770, 0
        %790 = vmatpush.bf16.msra.mxu0 0
        %791 = vmatpush.bf16.msra.mxu0 0
        %792 = vmatpush.bf16.msra.mxu0 0
        %793 = vmatpush.bf16.msra.mxu0 0
        %794 = vmatpush.bf16.msra.mxu0 0
        %795 = vmatpush.bf16.msra.mxu0 0
        %796 = vmatpush.bf16.msra.mxu0 %v784
        %797 = vmatpush.bf16.msra.mxu0 %v783
        %798 = vmatmul.bf16.gmra.mxu0 %v788
        %v799 = vpop.f32.mrf.mxu0
        %v800 = vadd.f32 0.0, %v799
        %v801 = vpop.f32.mrf.mxu0
        %802 = vdwg.mxu0
        %v803 = vsel %vm320, %v800, 0.0
        %804 = vadd.xlane.f32.xlu0 %v803
        %v805 = vpop.xlane.xlu0 %804
        %v806 = vmul.f32 %v805, %v330
        %v807 = vsub.f32 %v800, %v806
        %v808 = vmul.f32 %v807, %v807
        %v809 = vsel %vm320, %v808, 0.0
        %810 = vadd.xlane.f32.xlu0 %v809
        %v811 = vpop.xlane.xlu0 %810
        %v812 = vmul.f32 %v811, %v330
        %v813 = vadd.f32 %v812, 1e-05
        %v814 = vrsqrt.pop %v813
        %v815 = vmul.f32 %v814, %v813
        %v816 = vmul.f32 %v815, %v814
        %v817 = vmul.f32 0.5, %v816
        %v818 = vsub.f32 1.5, %v817
        %v819 = vmul.f32 %v814, %v818
        %vm820 = vweird.f32 %v813
        %vm821 = vweird.f32 %v814
        %vm822 = vmor %vm820, %vm821
        %v823 = vsel %vm822, %v814, %v819
        %v824 = vmul.f32 %v807, %v823
        %v826 = vperm.slane %v319, 0
        %v828 = vmul.f32 %v824, %v826
        %829 = vst.msk [vmem:[%s306] sm:$0xff] %vm320, %v828
        %s830 = sand.u32 %s158, 1
        %s831 = scalar_lea.sflag [#allocation5], %s830
        %s832 = sand.u32 %s158, 1
        %s833 = smul.addr %s832, 8
        %s834 = scalar_lea.vmem [#allocation11], %s833
        // Predicated region
        $region61: #{tpu_custom_call.1} parent=39 // pred_check
          %p835 = pneg %p168
        $region62: #{tpu_custom_call.1} parent=39 // pred_check_branch
          %837 = sbr.rel (%p835) target = $region64
        $region63: #{tpu_custom_call.1} parent=39 // pred_region
          %839 = vsyncadd %s831, 0
          %s840 = sadd.s32 %s29, %s28
          %s841 = smul.addr %s840, 8
          %s842 = scalar_lea.hbm %s5, %s841
          %s844 = sshll.u32 %s834, 4
          %s845 = int_to_ptr.vmem [resolvable:$true] %s844
          %s846 = sshll.u32 %s842, 4
          %s847 = int_to_ptr.hbm [resolvable:$true] %s846
          %849 = dma.vmem_to_hbm [thread:$0]  %s845, 128, %s847, %s831
        $region64: #{tpu_custom_call.1} parent=39 // pred_fallthru
          _
      $region40: #{tpu_custom_call.1} parent=5 // pred_fallthru
        _
      %p850 = scmp.le.s32.totalorder 2, %s19
      // Predicated region
      $region65: #{tpu_custom_call.1} parent=5 // pred_check
        %p851 = pneg %p850
      $region66: #{tpu_custom_call.1} parent=5 // pred_check_branch
        %853 = sbr.rel (%p851) target = $region68
      $region67: #{tpu_custom_call.1} parent=5 // pred_region
        %s854 = ssub.s32 %s19, 2
        // Predicated region
        $region69: #{tpu_custom_call.1} parent=67 // pred_check
          %p855 = pneg %p174
        $region70: #{tpu_custom_call.1} parent=67 // pred_check_branch
          %857 = sbr.rel (%p855) target = $region72
        $region71: #{tpu_custom_call.1} parent=67 // pred_region
          %s858 = sand.u32 %s159, 1
          %s859 = scalar_lea.sflag [#allocation5], %s858
          %s860 = sand.u32 %s159, 1
          %s861 = smul.addr %s860, 8
          %s862 = scalar_lea.vmem [#allocation11], %s861
          %864 = dma.done %s859, 128
        $region72: #{tpu_custom_call.1} parent=67 // pred_fallthru
          _
      $region68: #{tpu_custom_call.1} parent=5 // pred_fallthru
        _
    $region6: #{tpu_custom_call.1} parent=1 // loop_footer
      %s23 = sadd.s32 1, %s19
    $region7: #{tpu_custom_call.1} parent=1 // loop_footer_branch
      %18 = sbr.rel target = $region3
    $region8: #{tpu_custom_call.1} parent=1 // loop_exit
      _
    %865 = vsyncpa [#allocation4], 1
    %s866 = scalar_lea.sflag [#allocation4], 1
    %867 = vsyncpa %s866, 1
    %868 = vsyncpa [#allocation7], 1
    %869 = vsyncpa [#allocation10], 1
    %870 = vsyncpa [#allocation5], 1
    %s871 = scalar_lea.sflag [#allocation5], 1
    %872 = vsyncpa %s871, 1

</llo_original>
